<compile_context>
chip_gen: v6e
topology: v6e:2x2x1
jax: 0.10.0
libtpu: 0.0.40
codegen_flags: <defaults>
</compile_context>

<pallas_src>
import functools

import jax
import jax.numpy as jnp
from jax import lax
from jax.experimental import pallas as pl
from jax.experimental.pallas import tpu as pltpu


# ----------------------------------------------------------------------------
# Shared elementwise tail: fused BN affine + ReLU + inverted dropout.
# ----------------------------------------------------------------------------
def _bn_relu_dropout(y, mean, var, gamma, beta, bits, *, dropout_rate, eps):
    inv = lax.rsqrt(var + eps)                    # (1, F_out)
    scale = gamma * inv                           # fold BN into y*scale+shift
    shift = beta - mean * scale
    z = y * scale + shift
    z = jnp.maximum(z, 0.0)
    if dropout_rate > 0.0:
        thresh = jnp.uint32(min(int(round(dropout_rate * 2.0 ** 32)),
                                2 ** 32 - 1))
        keep = bits >= thresh                     # P(keep) = 1 - p
        z = jnp.where(keep, z, 0.0) * (1.0 / (1.0 - dropout_rate))
    return z


# ----------------------------------------------------------------------------
# Fused single-block kernel (whole batch resident in VMEM).
# ----------------------------------------------------------------------------
def blockb_fused_kernel(x_ref, w_ref, gamma_ref, beta_ref, bits_ref, o_ref,
                        *, dropout_rate, eps):
    x = x_ref[...]                                # (N, F_in)  f32
    w = w_ref[...]                                # (F_out, F_in) f32
    # Linear without bias (bias is cancelled by the BN mean subtraction).
    y = lax.dot_general(x, w, (((1,), (1,)), ((), ())),
                        preferred_element_type=jnp.float32)  # (N, F_out)
    n = y.shape[0]
    s = jnp.sum(y, axis=0, keepdims=True)
    s2 = jnp.sum(y * y, axis=0, keepdims=True)
    mean = s * (1.0 / n)
    var = s2 * (1.0 / n) - mean * mean            # biased variance (training)
    o_ref[...] = _bn_relu_dropout(
        y, mean, var, gamma_ref[...], beta_ref[...], bits_ref[...],
        dropout_rate=dropout_rate, eps=eps).astype(o_ref.dtype)


# ----------------------------------------------------------------------------
# Tiled path, pass 1: matmul per row block + global sum/sumsq accumulation.
# ----------------------------------------------------------------------------
def matmul_stats_kernel(x_ref, w_ref, y_ref, sum_ref, sumsq_ref):
    @pl.when(pl.program_id(0) == 0)
    def _():
        sum_ref[...] = jnp.zeros_like(sum_ref)
        sumsq_ref[...] = jnp.zeros_like(sumsq_ref)

    y = lax.dot_general(x_ref[...], w_ref[...], (((1,), (1,)), ((), ())),
                        preferred_element_type=jnp.float32)
    y_ref[...] = y
    sum_ref[...] += jnp.sum(y, axis=0, keepdims=True)
    sumsq_ref[...] += jnp.sum(y * y, axis=0, keepdims=True)


# ----------------------------------------------------------------------------
# Tiled path, pass 2: normalize + ReLU + dropout per row block.
# ----------------------------------------------------------------------------
def bn_relu_dropout_kernel(y_ref, sum_ref, sumsq_ref, gamma_ref, beta_ref,
                           bits_ref, o_ref, *, n_total, dropout_rate, eps):
    mean = sum_ref[...] * (1.0 / n_total)
    var = sumsq_ref[...] * (1.0 / n_total) - mean * mean
    o_ref[...] = _bn_relu_dropout(
        y_ref[...], mean, var, gamma_ref[...], beta_ref[...], bits_ref[...],
        dropout_rate=dropout_rate, eps=eps).astype(o_ref.dtype)


def _pick_block_n(n, cap=512):
    """Largest row-block <= cap that divides n (multiple of 8 when tiled)."""
    if n <= cap:
        return n
    for b in range(cap, 7, -8):
        if n % b == 0:
            return b
    # TODO(synk): pad ragged batch sizes instead of falling back to one block.
    return n


# ----------------------------------------------------------------------------
# Wrapper.
# ----------------------------------------------------------------------------
def blockb_forward(x, weight, bias, gamma, beta, key, *, dropout_rate,
                   eps=1e-5, block_cap=512, max_fused_vmem_bytes=8 << 20):
    """x: (N, F_in); weight: (F_out, F_in) (PyTorch convention).

    `bias` is accepted for API parity but not used: training-mode BatchNorm's
    mean subtraction exactly cancels the per-feature Linear bias.
    """
    del bias
    n, f_in = x.shape
    f_out, f_in_w = weight.shape
    assert f_in_w == f_in

    x = x.astype(jnp.float32)
    w = weight.astype(jnp.float32)
    g2 = gamma.reshape(1, f_out).astype(jnp.float32)
    be2 = beta.reshape(1, f_out).astype(jnp.float32)

    if dropout_rate > 0.0:
        bits = jax.random.bits(key, (n, f_out), dtype=jnp.uint32)
    else:
        bits = jnp.zeros((n, f_out), dtype=jnp.uint32)

    # Rough VMEM footprint of the fused, gridless kernel.
    fused_bytes = 4 * (n * f_in + 2 * n * f_out + f_out * f_in + 2 * f_out)

    if fused_bytes <= max_fused_vmem_bytes:
        kernel = functools.partial(blockb_fused_kernel,
                                   dropout_rate=dropout_rate, eps=eps)
        return pl.pallas_call(
            kernel,
            out_shape=jax.ShapeDtypeStruct((n, f_out), jnp.float32),
            in_specs=[pl.BlockSpec(memory_space=pltpu.MemorySpace.VMEM)] * 5,
            out_specs=pl.BlockSpec(memory_space=pltpu.MemorySpace.VMEM),
        )(x, w, g2, be2, bits)

    # ---- Tiled, two-pass path (BN stats over the FULL batch). ----
    block_n = _pick_block_n(n, cap=block_cap)
    nb = n // block_n

    y, s, s2 = pl.pallas_call(
        matmul_stats_kernel,
        out_shape=(jax.ShapeDtypeStruct((n, f_out), jnp.float32),
                   jax.ShapeDtypeStruct((1, f_out), jnp.float32),
                   jax.ShapeDtypeStruct((1, f_out), jnp.float32)),
        grid=(nb,),
        in_specs=[pl.BlockSpec((block_n, f_in), lambda i: (i, 0)),
                  pl.BlockSpec((f_out, f_in), lambda i: (0, 0))],   # resident W
        out_specs=(pl.BlockSpec((block_n, f_out), lambda i: (i, 0)),
                   pl.BlockSpec((1, f_out), lambda i: (0, 0)),      # accum
                   pl.BlockSpec((1, f_out), lambda i: (0, 0))),     # accum
        compiler_params=pltpu.CompilerParams(
            dimension_semantics=("arbitrary",)),
    )(x, w)

    kernel2 = functools.partial(bn_relu_dropout_kernel, n_total=n,
                                dropout_rate=dropout_rate, eps=eps)
    return pl.pallas_call(
        kernel2,
        out_shape=jax.ShapeDtypeStruct((n, f_out), jnp.float32),
        grid=(nb,),
        in_specs=[pl.BlockSpec((block_n, f_out), lambda i: (i, 0)),
                  pl.BlockSpec((1, f_out), lambda i: (0, 0)),
                  pl.BlockSpec((1, f_out), lambda i: (0, 0)),
                  pl.BlockSpec((1, f_out), lambda i: (0, 0)),
                  pl.BlockSpec((1, f_out), lambda i: (0, 0)),
                  pl.BlockSpec((block_n, f_out), lambda i: (i, 0))],
        out_specs=pl.BlockSpec((block_n, f_out), lambda i: (i, 0)),
        compiler_params=pltpu.CompilerParams(
            dimension_semantics=("parallel",)),
    )(y, s, s2, g2, be2, bits)


# ----------------------------------------------------------------------------
# Pure-JAX reference (with bias, sqrt form) for sanity checking.
# ----------------------------------------------------------------------------
def blockb_reference(x, weight, bias, gamma, beta, *, eps=1e-5):
    y = x @ weight.T + bias
    mean = jnp.mean(y, axis=0, keepdims=True)
    var = jnp.mean((y - mean) ** 2, axis=0, keepdims=True)
    z = gamma * (y - mean) / jnp.sqrt(var + eps) + beta
    return jnp.maximum(z, 0.0)


if __name__ == "__main__":
    batch, in_features, out_features = 8, 32, 32
    dropout_rate = 0.1

    root = jax.random.PRNGKey(0)
    k_x, k_w, k_b, k_drop = jax.random.split(root, 4)

    x = jax.random.normal(k_x, (batch, in_features), dtype=jnp.float32)
    bound = 1.0 / float(in_features) ** 0.5
    weight = jax.random.uniform(k_w, (out_features, in_features),
                                minval=-bound, maxval=bound,
                                dtype=jnp.float32)
    bias = jax.random.uniform(k_b, (out_features,), minval=-bound,
                              maxval=bound, dtype=jnp.float32)
    gamma = jnp.ones((out_features,), dtype=jnp.float32)
    beta = jnp.zeros((out_features,), dtype=jnp.float32)

    # 1) Fused path, dropout disabled -> must match the pure-JAX reference
    #    (also validates that dropping the Linear bias is exact under BN).
    ref = blockb_reference(x, weight, bias, gamma, beta)
    out_nodrop = blockb_forward(x, weight, bias, gamma, beta, k_drop,
                                dropout_rate=0.0)
    jax.block_until_ready(out_nodrop)
    assert jnp.allclose(out_nodrop, ref, atol=1e-4, rtol=1e-4)

    # 2) Fused path with dropout (training-mode inverted dropout).
    out = blockb_forward(x, weight, bias, gamma, beta, k_drop,
                         dropout_rate=dropout_rate)
    jax.block_until_ready(out)
    assert out.shape == (batch, out_features)
    assert jnp.all(jnp.isfinite(out))

    # 3) Tiled two-pass path (stats-accumulate + normalize) on a larger batch,
    #    forced by shrinking the fused-VMEM threshold and block cap.
    big_n = 64
    x_big = jax.random.normal(jax.random.fold_in(k_x, 1),
                              (big_n, in_features), dtype=jnp.float32)
    ref_big = blockb_reference(x_big, weight, bias, gamma, beta)
    out_big = blockb_forward(x_big, weight, bias, gamma, beta, k_drop,
                             dropout_rate=0.0,
                             block_cap=16, max_fused_vmem_bytes=0)
    jax.block_until_ready(out_big)
    assert jnp.allclose(out_big, ref_big, atol=1e-4, rtol=1e-4)

    print("KERNEL_OK")
</pallas_src>

<mosaic_0001>
module attributes {stable_mosaic.version = 11 : i64} {
  func.func @blockb_fused_kernel(%arg0: memref<8x32xf32, #tpu.memory_space<vmem>>, %arg1: memref<32x32xf32, #tpu.memory_space<vmem>>, %arg2: memref<1x32xf32, #tpu.memory_space<vmem>>, %arg3: memref<1x32xf32, #tpu.memory_space<vmem>>, %arg4: memref<8x32xi32, #tpu.memory_space<vmem>>, %arg5: memref<8x32xf32, #tpu.memory_space<vmem>>) attributes {dimension_semantics = [], scalar_prefetch = 0 : i64, scratch_operands = 0 : i64, tpu.core_type = #tpu.core_type<tc>} {
    %c0 = arith.constant 0 : index
    %c0_0 = arith.constant 0 : index
    %0 = vector.load %arg0[%c0, %c0_0] : memref<8x32xf32, #tpu.memory_space<vmem>>, vector<8x32xf32>
    %c0_1 = arith.constant 0 : index
    %c0_2 = arith.constant 0 : index
    %1 = vector.load %arg1[%c0_1, %c0_2] : memref<32x32xf32, #tpu.memory_space<vmem>>, vector<32x32xf32>
    %cst = arith.constant dense<0.000000e+00> : vector<8x32xf32>
    %2 = tpu.matmul %0, %1, %cst {dimension_numbers = #tpu.dot_dimension_numbers<[1], [1], [0], [0], [0, 0, 1, 0], [], []>} : vector<8x32xf32>, vector<32x32xf32>, vector<8x32xf32> -> vector<8x32xf32>
    %cst_3 = arith.constant dense<0.000000e+00> : vector<32xf32>
    %3 = vector.multi_reduction <add>, %2, %cst_3 [0] : vector<8x32xf32> to vector<32xf32>
    %4 = vector.shape_cast %3 : vector<32xf32> to vector<1x32xf32>
    %5 = arith.mulf %2, %2 : vector<8x32xf32>
    %cst_4 = arith.constant dense<0.000000e+00> : vector<32xf32>
    %6 = vector.multi_reduction <add>, %5, %cst_4 [0] : vector<8x32xf32> to vector<32xf32>
    %7 = vector.shape_cast %6 : vector<32xf32> to vector<1x32xf32>
    %cst_5 = arith.constant 1.250000e-01 : f32
    %8 = vector.broadcast %cst_5 : f32 to vector<1x32xf32>
    %9 = arith.mulf %4, %8 : vector<1x32xf32>
    %cst_6 = arith.constant 1.250000e-01 : f32
    %10 = vector.broadcast %cst_6 : f32 to vector<1x32xf32>
    %11 = arith.mulf %7, %10 : vector<1x32xf32>
    %12 = arith.mulf %9, %9 : vector<1x32xf32>
    %13 = arith.subf %11, %12 : vector<1x32xf32>
    %c0_7 = arith.constant 0 : index
    %c0_8 = arith.constant 0 : index
    %14 = vector.load %arg2[%c0_7, %c0_8] : memref<1x32xf32, #tpu.memory_space<vmem>>, vector<1x32xf32>
    %c0_9 = arith.constant 0 : index
    %c0_10 = arith.constant 0 : index
    %15 = vector.load %arg3[%c0_9, %c0_10] : memref<1x32xf32, #tpu.memory_space<vmem>>, vector<1x32xf32>
    %cst_11 = arith.constant 9.99999974E-6 : f32
    %16 = vector.broadcast %cst_11 : f32 to vector<1x32xf32>
    %17 = arith.addf %13, %16 : vector<1x32xf32>
    %18 = math.rsqrt %17 : vector<1x32xf32>
    %19 = arith.mulf %14, %18 : vector<1x32xf32>
    %20 = arith.mulf %9, %19 : vector<1x32xf32>
    %21 = arith.subf %15, %20 : vector<1x32xf32>
    %22 = vector.broadcast %19 : vector<1x32xf32> to vector<8x32xf32>
    %23 = arith.mulf %2, %22 : vector<8x32xf32>
    %24 = vector.broadcast %21 : vector<1x32xf32> to vector<8x32xf32>
    %25 = arith.addf %23, %24 : vector<8x32xf32>
    %cst_12 = arith.constant 0.000000e+00 : f32
    %26 = vector.broadcast %cst_12 : f32 to vector<8x32xf32>
    %27 = arith.maximumf %25, %26 : vector<8x32xf32>
    %c0_13 = arith.constant 0 : index
    %c0_14 = arith.constant 0 : index
    %28 = vector.load %arg5[%c0_13, %c0_14] : memref<8x32xf32, #tpu.memory_space<vmem>>, vector<8x32xf32>
    tpu.vector_store %arg5[%c0_13, %c0_14], %27 {strides = array<i32>} : memref<8x32xf32, #tpu.memory_space<vmem>>, vector<8x32xf32>,
    return
  }
}

</mosaic_0001>

<llo_original>
// kernel: tpu_custom_call.1
$region0: #{tpu_custom_call.1}
  #allocation0 [shape = 'u32[]', space=smem, size = 0x4, offset = 0x4, fixed_abs, tag = 'smem constant byte address 0x4 - core index']
  #allocation1 [shape = 'u32[144,128]{1,0:T(1,128)}', space=vmem, size = 0x12000, scoped, tag = 'internal scratch']
  %s0 = inlined_call_operand.hbm [shape: f32[8,32], index: 0, kind: input, shape index: {}]
  %s1 = inlined_call_operand.hbm [shape: f32[32,32], index: 1, kind: input, shape index: {}]
  %s2 = inlined_call_operand.vmem [shape: f32[1,32], index: 2, kind: input, shape index: {}]
  %s3 = inlined_call_operand.vmem [shape: f32[1,32], index: 3, kind: input, shape index: {}]
  %s4 = inlined_call_operand.hbm [shape: u32[8,32], index: 4, kind: input, shape index: {}]
  %s5 = inlined_call_operand.hbm [shape: f32[8,32], index: 5, kind: output, shape index: {}]
  %s6 = sld [smem:[#allocation0]]
  $region42: #{tpu_custom_call.1} parent=0
    _
  %s8 = ssub.s32 1, %s6
  %s9 = scalar_select 0, %s8, %s6
  $region1: #{tpu_custom_call.1} parent=0
    #allocation2 [shape = 'u8[4096]{0}', space=vmem, size = 0x1000, scoped, tag = 'input window, operand 0, single buffered']
    #allocation3 [shape = 's32[1]{0}', space=sflag, size = 0x4, scoped, tag = 'scoped memory for tpu_custom_call.1']
    #allocation4 [shape = 's32[1]{0}', space=sflag, size = 0x4, scoped, tag = 'scoped memory for tpu_custom_call.1']
    #allocation5 [shape = 'u8[16384]{0}', space=vmem, size = 0x4000, scoped, tag = 'input window, operand 1, single buffered']
    #allocation6 [shape = 's32[1]{0}', space=sflag, size = 0x4, scoped, tag = 'scoped memory for tpu_custom_call.1']
    #allocation7 [shape = 'u8[4096]{0}', space=vmem, size = 0x1000, scoped, tag = 'input window, operand 4, single buffered']
    #allocation8 [shape = 'u8[4096]{0}', space=vmem, size = 0x1000, scoped, tag = 'output window, operand 0, single buffered']
    %10 = vsyncpa [#allocation3], 0
    %11 = vsyncpa [#allocation6], 0
    %12 = vsyncpa [#allocation4], 0
    // Predicated region
    $region2: #{tpu_custom_call.1} parent=1 // pred_check
      _
    $region3: #{tpu_custom_call.1} parent=1 // pred_check_branch
      %14 = sbr.rel (0) target = $region5
    $region4: #{tpu_custom_call.1} parent=1 // pred_region
      %s16 = ssub.s32 128, 128
      %17 = vsyncadd [#allocation3], %s16
      %s19 = sshll.u32 [#allocation2], 4
      %s20 = int_to_ptr.vmem [resolvable:$true] %s19
      %22 = dma.hbm_to_vmem [thread:$0]  %s0, 128, %s20, [#allocation3]
    $region5: #{tpu_custom_call.1} parent=1 // pred_fallthru
      _
    // Predicated region
    $region6: #{tpu_custom_call.1} parent=1 // pred_check
      _
    $region7: #{tpu_custom_call.1} parent=1 // pred_check_branch
      %24 = sbr.rel (0) target = $region9
    $region8: #{tpu_custom_call.1} parent=1 // pred_region
      %s26 = ssub.s32 512, 512
      %27 = vsyncadd [#allocation6], %s26
      %s28 = sshll.u32 [#allocation5], 4
      %s29 = int_to_ptr.vmem [resolvable:$true] %s28
      %34 = dma.hbm_to_vmem [thread:$0]  %s1, 512, %s29, [#allocation6], 128, 128, 8
    $region9: #{tpu_custom_call.1} parent=1 // pred_fallthru
      _
    // Predicated region
    $region10: #{tpu_custom_call.1} parent=1 // pred_check
      _
    $region11: #{tpu_custom_call.1} parent=1 // pred_check_branch
      %36 = sbr.rel (0) target = $region13
    $region12: #{tpu_custom_call.1} parent=1 // pred_region
      _
    $region13: #{tpu_custom_call.1} parent=1 // pred_fallthru
      _
    // Predicated region
    $region14: #{tpu_custom_call.1} parent=1 // pred_check
      _
    $region15: #{tpu_custom_call.1} parent=1 // pred_check_branch
      %38 = sbr.rel (0) target = $region17
    $region16: #{tpu_custom_call.1} parent=1 // pred_region
      _
    $region17: #{tpu_custom_call.1} parent=1 // pred_fallthru
      _
    // Predicated region
    $region18: #{tpu_custom_call.1} parent=1 // pred_check
      _
    $region19: #{tpu_custom_call.1} parent=1 // pred_check_branch
      %40 = sbr.rel (0) target = $region21
    $region20: #{tpu_custom_call.1} parent=1 // pred_region
      %s42 = ssub.s32 128, 128
      %43 = vsyncadd [#allocation6], %s42
      %s45 = sshll.u32 [#allocation7], 4
      %s46 = int_to_ptr.vmem [resolvable:$true] %s45
      %48 = dma.hbm_to_vmem [thread:$0]  %s4, 128, %s46, [#allocation6]
    $region21: #{tpu_custom_call.1} parent=1 // pred_fallthru
      _
    // Predicated region
    $region22: #{tpu_custom_call.1} parent=1 // pred_check
      _
    $region23: #{tpu_custom_call.1} parent=1 // pred_check_branch
      %50 = sbr.rel (0) target = $region25
    $region24: #{tpu_custom_call.1} parent=1 // pred_region
      %51 = dma.done [#allocation3], 128
    $region25: #{tpu_custom_call.1} parent=1 // pred_fallthru
      _
    // Predicated region
    $region26: #{tpu_custom_call.1} parent=1 // pred_check
      _
    $region27: #{tpu_custom_call.1} parent=1 // pred_check_branch
      %53 = sbr.rel (0) target = $region29
    $region28: #{tpu_custom_call.1} parent=1 // pred_region
      %54 = dma.done [#allocation6], 512
    $region29: #{tpu_custom_call.1} parent=1 // pred_fallthru
      _
    // Predicated region
    $region30: #{tpu_custom_call.1} parent=1 // pred_check
      _
    $region31: #{tpu_custom_call.1} parent=1 // pred_check_branch
      %56 = sbr.rel (0) target = $region33
    $region32: #{tpu_custom_call.1} parent=1 // pred_region
      %57 = dma.done [#allocation6], 128
    $region33: #{tpu_custom_call.1} parent=1 // pred_fallthru
      _
    %v58 = vld [vmem:[#allocation2] sm:$0xff]
    %v59 = vld [vmem:[#allocation5] sm:$0xff]
    %v60 = vld [vmem:[#allocation5 + $0x8] sm:$0xff]
    %v61 = vld [vmem:[#allocation5 + $0x10] sm:$0xff]
    %v62 = vld [vmem:[#allocation5 + $0x18] sm:$0xff]
    %vm63 = vcmask 261120
    %v65 = vsel %vm63, %v58, 0
    %v68 = vsel %vm63, %v59, 0
    %v71 = vsel %vm63, %v60, 0
    %v74 = vsel %vm63, %v61, 0
    %v77 = vsel %vm63, %v62, 0
    %79 = vmatprep.subr.mxu0 0.0
    %80 = vmatpush1.xpose.msra.mxu0 0.0
    %81 = vmatprep.subr.mxu0 0.0
    %82 = vmatpush1.xpose.msra.mxu0 0.0
    %83 = vmatprep.subr.mxu0 0.0
    %84 = vmatpush1.xpose.msra.mxu0 0.0
    %85 = vmatprep.subr.mxu0 0.0
    %86 = vmatpush1.xpose.msra.mxu0 0.0
    %87 = vmatprep.subr.mxu0 0.0
    %88 = vmatpush1.xpose.msra.mxu0 0.0
    %89 = vmatprep.subr.mxu0 0.0
    %90 = vmatpush1.xpose.msra.mxu0 0.0
    %91 = vmatprep.subr.mxu0 0.0
    %92 = vmatpush1.xpose.msra.mxu0 0.0
    %93 = vmatprep.subr.mxu0 0.0
    %94 = vmatpush1.xpose.msra.mxu0 0.0
    %95 = vmatprep.subr.mxu0 0.0
    %96 = vmatpush1.xpose.msra.mxu0 0.0
    %97 = vmatprep.subr.mxu0 0.0
    %98 = vmatpush1.xpose.msra.mxu0 0.0
    %99 = vmatprep.subr.mxu0 0.0
    %100 = vmatpush1.xpose.msra.mxu0 0.0
    %101 = vmatprep.subr.mxu0 0.0
    %102 = vmatpush1.xpose.msra.mxu0 0.0
    %103 = vmatprep.subr.mxu0 0.0
    %104 = vmatpush1.xpose.msra.mxu0 %v77
    %105 = vmatprep.subr.mxu0 0.0
    %106 = vmatpush1.xpose.msra.mxu0 %v74
    %107 = vmatprep.subr.mxu0 0.0
    %108 = vmatpush1.xpose.msra.mxu0 %v71
    %109 = vmatprep.subr.mxu0 0.0
    %110 = vmatpush1.xpose.msra.mxu0 %v68
    %111 = vmatprep.subr.mxu0 0.0
    %112 = vmatpush2.xpose.msra.mxu0 0.0
    %113 = vmatprep.subr.mxu0 0.0
    %114 = vmatpush2.xpose.msra.mxu0 0.0
    %115 = vmatprep.subr.mxu0 0.0
    %116 = vmatpush2.xpose.msra.mxu0 0.0
    %117 = vmatprep.subr.mxu0 0.0
    %118 = vmatpush2.xpose.msra.mxu0 0.0
    %119 = vmatprep.subr.mxu0 0.0
    %120 = vmatpush2.xpose.msra.mxu0 0.0
    %121 = vmatprep.subr.mxu0 0.0
    %122 = vmatpush2.xpose.msra.mxu0 0.0
    %123 = vmatprep.subr.mxu0 0.0
    %124 = vmatpush2.xpose.msra.mxu0 0.0
    %125 = vmatprep.subr.mxu0 0.0
    %126 = vmatpush2.xpose.msra.mxu0 0.0
    %127 = vmatprep.subr.mxu0 0.0
    %128 = vmatpush2.xpose.msra.mxu0 0.0
    %129 = vmatprep.subr.mxu0 0.0
    %130 = vmatpush2.xpose.msra.mxu0 0.0
    %131 = vmatprep.subr.mxu0 0.0
    %132 = vmatpush2.xpose.msra.mxu0 0.0
    %133 = vmatprep.subr.mxu0 0.0
    %134 = vmatpush2.xpose.msra.mxu0 0.0
    %135 = vmatprep.subr.mxu0 0.0
    %136 = vmatpush2.xpose.msra.mxu0 0.0
    %137 = vmatprep.subr.mxu0 0.0
    %138 = vmatpush2.xpose.msra.mxu0 0.0
    %139 = vmatprep.subr.mxu0 0.0
    %140 = vmatpush2.xpose.msra.mxu0 0.0
    %141 = vmatprep.subr.mxu0 0.0
    %142 = vmatpush2.xpose.msra.mxu0 0.0
    %143 = vmatprep.mubr.f32.mxu0 0.0
    %144 = vmatmul.mubr.f32.gmra.mxu0 %v65
    %v145 = vpop.f32.mrf.mxu0
    %v146 = vadd.f32 0.0, %v145
    %v147 = vpop.f32.mrf.mxu0
    %148 = vdwg.mxu0
    %v149 = vsel %vm63, %v146, 0.0
    %v150 = vrot.slane %v149, 4
    %v151 = vadd.f32 %v149, %v150
    %v152 = vrot.slane %v151, 2
    %v153 = vadd.f32 %v151, %v152
    %v154 = vrot.slane %v153, 1
    %v155 = vadd.f32 %v153, %v154
    %v156 = vmul.f32 %v146, %v146
    %v157 = vsel %vm63, %v156, 0.0
    %v158 = vrot.slane %v157, 4
    %v159 = vadd.f32 %v157, %v158
    %v160 = vrot.slane %v159, 2
    %v161 = vadd.f32 %v159, %v160
    %v162 = vrot.slane %v161, 1
    %v163 = vadd.f32 %v161, %v162
    %v164 = vmul.f32 %v155, 0.125
    %v165 = vmul.f32 %v163, 0.125
    %v166 = vmul.f32 %v164, %v164
    %v167 = vsub.f32 %v165, %v166
    %v168 = vld [vmem:[%s2] sm:$0x1]
    %v169 = vld [vmem:[%s3] sm:$0x1]
    %v170 = vadd.f32 %v167, 1e-05
    %v171 = vrsqrt.pop %v170
    %v172 = vmul.f32 %v168, %v171
    %v173 = vmul.f32 %v164, %v172
    %v174 = vsub.f32 %v169, %v173
    %v176 = vlaneseq
    %v177 = vshrl.u32 %v176, 7
    %v178 = vsub.s32 0, %v177
    %v179 = vrot.slane %v172, %v178
    %v181 = vmul.f32 %v146, %v179
    %v183 = vlaneseq
    %v184 = vshrl.u32 %v183, 7
    %v185 = vsub.s32 0, %v184
    %v186 = vrot.slane %v174, %v185
    %v188 = vadd.f32 %v181, %v186
    %v189 = vmax.f32 %v188, 0.0
    %190 = vst.msk [vmem:[#allocation8] sm:$0xff] %vm63, %v189
    // Predicated region
    $region34: #{tpu_custom_call.1} parent=1 // pred_check
      _
    $region35: #{tpu_custom_call.1} parent=1 // pred_check_branch
      %192 = sbr.rel (0) target = $region37
    $region36: #{tpu_custom_call.1} parent=1 // pred_region
      %s194 = ssub.s32 128, 128
      %195 = vsyncadd [#allocation4], %s194
      %s197 = sshll.u32 [#allocation8], 4
      %s198 = int_to_ptr.vmem [resolvable:$true] %s197
      %200 = dma.vmem_to_hbm [thread:$0]  %s198, 128, %s5, [#allocation4]
    $region37: #{tpu_custom_call.1} parent=1 // pred_fallthru
      _
    // Predicated region
    $region38: #{tpu_custom_call.1} parent=1 // pred_check
      _
    $region39: #{tpu_custom_call.1} parent=1 // pred_check_branch
      %202 = sbr.rel (0) target = $region41
    $region40: #{tpu_custom_call.1} parent=1 // pred_region
      %203 = dma.done [#allocation4], 128
    $region41: #{tpu_custom_call.1} parent=1 // pred_fallthru
      _
    %204 = vsyncpa [#allocation3], 1
    %205 = vsyncpa [#allocation6], 1
    %206 = vsyncpa [#allocation4], 1

</llo_original>
